<compile_context>
chip_gen: v7x
topology: tpu7x:2x2x1
jax: 0.10.0
libtpu: 0.0.40
codegen_flags: <defaults>
</compile_context>

<pallas_src>
import jax
import jax.numpy as jnp
from jax.experimental import pallas as pl
from jax.experimental.pallas import tpu as pltpu

_LANE = 128
_TM_MAX = 32768          # max lane tile: 4 MiB of f32 x per group row at C=32
_GB_MAX = 32             # max group rows per step (static unroll bound)
_TARGET_X_BYTES = 4 << 20
_VMEM_TILE_BUDGET = 24 << 20   # tile-sizing budget (safe on v5e/v6e/v7x)


def _round_up(x, m):
    return ((x + m - 1) // m) * m


def _round_down(x, m):
    return (x // m) * m


def simplenet_kernel(x_ref, wf_ref, bf_ref, wt_ref, o_ref):
    # x_ref : (gb, C, tm)  channels-on-sublane input tile (gb group rows)
    # wf_ref: (Hd, C)      fused weight  (0.01 * wproj @ w1 * bn_scale)^T
    # bf_ref: (Hd, 1)      fused bias    (b1 * bn_scale + bn_shift)^T
    # wt_ref: (1, Hd)      tail weight   wtail^T
    # o_ref : (gb, 1, tm)  lane-dense score tile
    wf = wf_ref[...]
    bf = bf_ref[...]
    wt = wt_ref[...]
    gb = x_ref.shape[0]
    for g in range(gb):  # static unroll; gb is capped at _GB_MAX
        x = x_ref[g]                                                   # (C, tm)
        h = jnp.dot(wf, x, preferred_element_type=jnp.float32)         # (Hd, tm)
        h = h + bf                                                     # bias (broadcast over lanes)
        h = jnp.where(h >= 0, h, 0.2 * h)                              # LeakyReLU(0.2)
        o_ref[g] = jnp.dot(wt, h, preferred_element_type=jnp.float32).astype(o_ref.dtype)


def _choose_tiles(G, C, M, Hd, itemsize=4):
    """Pick (tm, gb): lane tile (multiple of 128) and group rows per step."""
    m128 = _round_up(M, _LANE)
    per_col = (2 * C + 2) * itemsize                 # dbuf x + dbuf out per group-row per lane
    tm_budget = _VMEM_TILE_BUDGET // (per_col + Hd * itemsize)
    tm = min(m128, _TM_MAX, max(_LANE, _round_down(tm_budget, _LANE)))
    # If M per group is small, block over groups so each step still moves several MiB.
    target_cols = max(_LANE, _TARGET_X_BYTES // (C * itemsize))
    gb = max(1, min(G, _GB_MAX, target_cols // tm))
    gb_budget = max(1, (_VMEM_TILE_BUDGET - Hd * tm * itemsize) // (per_col * tm))
    gb = min(gb, gb_budget)
    return int(tm), int(gb)


def simplenet_forward(z, params):
    """Eval-mode SimpleNet forward.

    z: (B, V, C, T, H, W) float32  ->  z_n_scores: (B, V, T, H, W, 1) float32
    """
    B, V, C, T, H, W = z.shape
    G = B * V
    M = T * H * W

    # Contiguous reshape (no transpose, no padding, no extra HBM traffic).
    x = z.reshape(G, C, M)

    wf = params["wf"]      # (Hd, C)
    bf = params["bf"]      # (Hd, 1)
    wt = params["wt"]      # (1, Hd)
    Hd = wf.shape[0]

    itemsize = x.dtype.itemsize
    tm, gb = _choose_tiles(G, C, M, Hd, itemsize)
    num_m = pl.cdiv(M, tm)          # ragged last block handled by Pallas masking
    num_g = pl.cdiv(G, gb)

    # VMEM footprint: double-buffered x/out tiles + (Hd, tm) h temp; generous margin.
    need = (2 * gb * C * tm + 2 * gb * tm + Hd * tm) * itemsize
    vmem_limit = int(min(48 << 20, max(16 << 20, 2 * need + (8 << 20))))

    out = pl.pallas_call(
        simplenet_kernel,
        out_shape=jax.ShapeDtypeStruct((G, 1, M), jnp.float32),
        grid_spec=pltpu.PrefetchScalarGridSpec(
            num_scalar_prefetch=0,
            # M-tile axis first (high-trip-count) so megacore sharding splits it.
            grid=(num_m, num_g),
            in_specs=[
                pl.BlockSpec((gb, C, tm), lambda m, g: (g, 0, m)),   # x tile
                pl.BlockSpec((Hd, C), lambda m, g: (0, 0)),           # fused W^T (VMEM resident)
                pl.BlockSpec((Hd, 1), lambda m, g: (0, 0)),           # fused bias
                pl.BlockSpec((1, Hd), lambda m, g: (0, 0)),           # tail W^T
            ],
            out_specs=pl.BlockSpec((gb, 1, tm), lambda m, g: (g, 0, m)),
        ),
        compiler_params=pltpu.CompilerParams(
            dimension_semantics=("parallel", "parallel"),
            vmem_limit_bytes=vmem_limit),
    )(x, wf, bf, wt)

    # (G, 1, M) -> (B, V, T, H, W, 1): free, contiguous reshape (no slice copy).
    return out.reshape(B, V, T, H, W, 1)


# ------------------------- parameter construction -------------------------

def xavier_normal(key, out_features, in_features):
    # torch.nn.init.xavier_normal_ on a (out, in) Linear weight
    std = jnp.sqrt(2.0 / (in_features + out_features))
    return std * jax.random.normal(key, (out_features, in_features), jnp.float32)


def make_raw_params(key, C, D, Hd):
    k_proj, k_w1, k_b1, k_tail = jax.random.split(key, 4)

    # Projection: Linear(C, D, bias=False), xavier_normal weight.
    wproj = jnp.transpose(xavier_normal(k_proj, D, C))         # (C, D)

    # Discriminator block1: Linear(D, Hd) with bias (torch default bias init).
    w1 = jnp.transpose(xavier_normal(k_w1, Hd, D))              # (D, Hd)
    bound = 1.0 / jnp.sqrt(float(D))
    b1 = jax.random.uniform(k_b1, (1, Hd), jnp.float32, -bound, bound)

    # BatchNorm1d(Hd), eval mode, default init (gamma=1, beta=0, mean=0, var=1).
    gamma = jnp.ones((1, Hd), jnp.float32)
    beta = jnp.zeros((1, Hd), jnp.float32)
    running_mean = jnp.zeros((1, Hd), jnp.float32)
    running_var = jnp.ones((1, Hd), jnp.float32)
    eps = 1e-5
    bn_scale = gamma / jnp.sqrt(running_var + eps)
    bn_shift = beta - running_mean * bn_scale

    # Discriminator tail: Linear(Hd, 1, bias=False)
    wtail = jnp.transpose(xavier_normal(k_tail, 1, Hd))         # (Hd, 1)

    return {"wproj": wproj, "w1": w1, "b1": b1,
            "bn_scale": bn_scale, "bn_shift": bn_shift, "wtail": wtail}


def fuse_params(raw):
    """Fold (x*0.01) @ wproj @ w1 + b1 and eval-BN into one affine map."""
    Wf = 0.01 * (raw["wproj"] @ raw["w1"]) * raw["bn_scale"]    # (C, Hd)
    bf = raw["b1"] * raw["bn_scale"] + raw["bn_shift"]          # (1, Hd)
    return {"wf": jnp.transpose(Wf),            # (Hd, C)
            "bf": jnp.transpose(bf),            # (Hd, 1)
            "wt": jnp.transpose(raw["wtail"])}  # (1, Hd)


def reference_forward(z, raw):
    """Pure-JAX reference of the original (unfused) math."""
    B, V, C, T, H, W = z.shape
    x = jnp.transpose(z, (0, 1, 3, 4, 5, 2)).reshape(-1, C) * 0.01
    h = x @ raw["wproj"]
    h = h @ raw["w1"] + raw["b1"]
    h = h * raw["bn_scale"] + raw["bn_shift"]
    h = jnp.where(h >= 0, h, 0.2 * h)
    out = h @ raw["wtail"]
    return out.reshape(B, V, T, H, W, 1)


if __name__ == "__main__":
    # Small shape consistent with (B, V, C, T, H, W): B=2, V=2, C=32, T=2, H=8, W=8
    B, V, C, T, Hs, Ws = 2, 2, 32, 2, 8, 8
    D, Hd = 32, 32

    key = jax.random.PRNGKey(0)
    k_in, k_p = jax.random.split(key)
    z = jax.random.normal(k_in, (B, V, C, T, Hs, Ws), jnp.float32)

    raw = make_raw_params(k_p, C, D, Hd)
    params = fuse_params(raw)

    out = jax.block_until_ready(simplenet_forward(z, params))
    ref = reference_forward(z, raw)

    assert out.shape == (B, V, T, Hs, Ws, 1), out.shape
    assert jnp.allclose(out, ref, atol=1e-5, rtol=1e-5), "mismatch vs reference"
    print("KERNEL_OK")
</pallas_src>

<mosaic_0001>
module attributes {stable_mosaic.version = 11 : i64} {
  func.func @simplenet_kernel(%arg0: i32, %arg1: i32, %arg2: memref<4x32x128xf32, #tpu.memory_space<vmem>>, %arg3: memref<32x32xf32, #tpu.memory_space<vmem>>, %arg4: memref<32x1xf32, #tpu.memory_space<vmem>>, %arg5: memref<1x32xf32, #tpu.memory_space<vmem>>, %arg6: memref<4x1x128xf32, #tpu.memory_space<vmem>>) attributes {dimension_semantics = [#tpu.dimension_semantics<parallel>, #tpu.dimension_semantics<parallel>], iteration_bounds = array<i64: 1, 1>, scalar_prefetch = 0 : i64, scratch_operands = 0 : i64, tpu.core_type = #tpu.core_type<tc>, window_params = [{transform_indices = @transform_0, window_bounds = array<i64: 4, 32, 128>}, {pipeline_mode = #tpu.pipeline_mode<synchronous>, transform_indices = @transform_1, window_bounds = array<i64: 32, 32>}, {pipeline_mode = #tpu.pipeline_mode<synchronous>, transform_indices = @transform_2, window_bounds = array<i64: 32, 1>}, {pipeline_mode = #tpu.pipeline_mode<synchronous>, transform_indices = @transform_3, window_bounds = array<i64: 1, 32>}, {transform_indices = @transform_4, window_bounds = array<i64: 4, 1, 128>}]} {
    %c0 = arith.constant 0 : index
    %c0_0 = arith.constant 0 : index
    %0 = vector.load %arg3[%c0, %c0_0] : memref<32x32xf32, #tpu.memory_space<vmem>>, vector<32x32xf32>
    %c0_1 = arith.constant 0 : index
    %c0_2 = arith.constant 0 : index
    %1 = vector.load %arg4[%c0_1, %c0_2] : memref<32x1xf32, #tpu.memory_space<vmem>>, vector<32x1xf32>
    %c0_3 = arith.constant 0 : index
    %c0_4 = arith.constant 0 : index
    %2 = vector.load %arg5[%c0_3, %c0_4] : memref<1x32xf32, #tpu.memory_space<vmem>>, vector<1x32xf32>
    %c0_5 = arith.constant 0 : index
    %c0_6 = arith.constant 0 : index
    %c0_7 = arith.constant 0 : index
    %3 = vector.load %arg2[%c0_5, %c0_6, %c0_7] : memref<4x32x128xf32, #tpu.memory_space<vmem>>, vector<1x32x128xf32>
    %4 = vector.shape_cast %3 : vector<1x32x128xf32> to vector<32x128xf32>
    %cst = arith.constant dense<0.000000e+00> : vector<32x128xf32>
    %5 = tpu.matmul %0, %4, %cst {dimension_numbers = #tpu.dot_dimension_numbers<[1], [0], [0], [1], [0, 0, 1, 1], [], []>} : vector<32x32xf32>, vector<32x128xf32>, vector<32x128xf32> -> vector<32x128xf32>
    %6 = vector.broadcast %1 : vector<32x1xf32> to vector<32x128xf32>
    %7 = arith.addf %5, %6 : vector<32x128xf32>
    %cst_8 = arith.constant 0.000000e+00 : f32
    %8 = vector.broadcast %cst_8 : f32 to vector<32x128xf32>
    %9 = arith.cmpf oge, %7, %8 : vector<32x128xf32>
    %cst_9 = arith.constant 2.000000e-01 : f32
    %10 = vector.broadcast %cst_9 : f32 to vector<32x128xf32>
    %11 = arith.mulf %10, %7 : vector<32x128xf32>
    %12 = arith.select %9, %7, %11 : vector<32x128xi1>, vector<32x128xf32>
    %cst_10 = arith.constant dense<0.000000e+00> : vector<1x128xf32>
    %13 = tpu.matmul %2, %12, %cst_10 {dimension_numbers = #tpu.dot_dimension_numbers<[1], [0], [0], [1], [0, 0, 1, 1], [], []>} : vector<1x32xf32>, vector<32x128xf32>, vector<1x128xf32> -> vector<1x128xf32>
    %c0_11 = arith.constant 0 : index
    %c0_12 = arith.constant 0 : index
    %c0_13 = arith.constant 0 : index
    %14 = vector.load %arg6[%c0_11, %c0_12, %c0_13] : memref<4x1x128xf32, #tpu.memory_space<vmem>>, vector<1x1x128xf32>
    %15 = vector.shape_cast %14 : vector<1x1x128xf32> to vector<1x128xf32>
    %16 = vector.shape_cast %13 : vector<1x128xf32> to vector<1x1x128xf32>
    tpu.vector_store %arg6[%c0_11, %c0_12, %c0_13], %16 {strides = array<i32>} : memref<4x1x128xf32, #tpu.memory_space<vmem>>, vector<1x1x128xf32>,
    %c1 = arith.constant 1 : index
    %c0_14 = arith.constant 0 : index
    %c0_15 = arith.constant 0 : index
    %17 = vector.load %arg2[%c1, %c0_14, %c0_15] : memref<4x32x128xf32, #tpu.memory_space<vmem>>, vector<1x32x128xf32>
    %18 = vector.shape_cast %17 : vector<1x32x128xf32> to vector<32x128xf32>
    %cst_16 = arith.constant dense<0.000000e+00> : vector<32x128xf32>
    %19 = tpu.matmul %0, %18, %cst_16 {dimension_numbers = #tpu.dot_dimension_numbers<[1], [0], [0], [1], [0, 0, 1, 1], [], []>} : vector<32x32xf32>, vector<32x128xf32>, vector<32x128xf32> -> vector<32x128xf32>
    %20 = vector.broadcast %1 : vector<32x1xf32> to vector<32x128xf32>
    %21 = arith.addf %19, %20 : vector<32x128xf32>
    %cst_17 = arith.constant 0.000000e+00 : f32
    %22 = vector.broadcast %cst_17 : f32 to vector<32x128xf32>
    %23 = arith.cmpf oge, %21, %22 : vector<32x128xf32>
    %cst_18 = arith.constant 2.000000e-01 : f32
    %24 = vector.broadcast %cst_18 : f32 to vector<32x128xf32>
    %25 = arith.mulf %24, %21 : vector<32x128xf32>
    %26 = arith.select %23, %21, %25 : vector<32x128xi1>, vector<32x128xf32>
    %cst_19 = arith.constant dense<0.000000e+00> : vector<1x128xf32>
    %27 = tpu.matmul %2, %26, %cst_19 {dimension_numbers = #tpu.dot_dimension_numbers<[1], [0], [0], [1], [0, 0, 1, 1], [], []>} : vector<1x32xf32>, vector<32x128xf32>, vector<1x128xf32> -> vector<1x128xf32>
    %c1_20 = arith.constant 1 : index
    %c0_21 = arith.constant 0 : index
    %c0_22 = arith.constant 0 : index
    %28 = vector.load %arg6[%c1_20, %c0_21, %c0_22] : memref<4x1x128xf32, #tpu.memory_space<vmem>>, vector<1x1x128xf32>
    %29 = vector.shape_cast %28 : vector<1x1x128xf32> to vector<1x128xf32>
    %30 = vector.shape_cast %27 : vector<1x128xf32> to vector<1x1x128xf32>
    tpu.vector_store %arg6[%c1_20, %c0_21, %c0_22], %30 {strides = array<i32>} : memref<4x1x128xf32, #tpu.memory_space<vmem>>, vector<1x1x128xf32>,
    %c2 = arith.constant 2 : index
    %c0_23 = arith.constant 0 : index
    %c0_24 = arith.constant 0 : index
    %31 = vector.load %arg2[%c2, %c0_23, %c0_24] : memref<4x32x128xf32, #tpu.memory_space<vmem>>, vector<1x32x128xf32>
    %32 = vector.shape_cast %31 : vector<1x32x128xf32> to vector<32x128xf32>
    %cst_25 = arith.constant dense<0.000000e+00> : vector<32x128xf32>
    %33 = tpu.matmul %0, %32, %cst_25 {dimension_numbers = #tpu.dot_dimension_numbers<[1], [0], [0], [1], [0, 0, 1, 1], [], []>} : vector<32x32xf32>, vector<32x128xf32>, vector<32x128xf32> -> vector<32x128xf32>
    %34 = vector.broadcast %1 : vector<32x1xf32> to vector<32x128xf32>
    %35 = arith.addf %33, %34 : vector<32x128xf32>
    %cst_26 = arith.constant 0.000000e+00 : f32
    %36 = vector.broadcast %cst_26 : f32 to vector<32x128xf32>
    %37 = arith.cmpf oge, %35, %36 : vector<32x128xf32>
    %cst_27 = arith.constant 2.000000e-01 : f32
    %38 = vector.broadcast %cst_27 : f32 to vector<32x128xf32>
    %39 = arith.mulf %38, %35 : vector<32x128xf32>
    %40 = arith.select %37, %35, %39 : vector<32x128xi1>, vector<32x128xf32>
    %cst_28 = arith.constant dense<0.000000e+00> : vector<1x128xf32>
    %41 = tpu.matmul %2, %40, %cst_28 {dimension_numbers = #tpu.dot_dimension_numbers<[1], [0], [0], [1], [0, 0, 1, 1], [], []>} : vector<1x32xf32>, vector<32x128xf32>, vector<1x128xf32> -> vector<1x128xf32>
    %c2_29 = arith.constant 2 : index
    %c0_30 = arith.constant 0 : index
    %c0_31 = arith.constant 0 : index
    %42 = vector.load %arg6[%c2_29, %c0_30, %c0_31] : memref<4x1x128xf32, #tpu.memory_space<vmem>>, vector<1x1x128xf32>
    %43 = vector.shape_cast %42 : vector<1x1x128xf32> to vector<1x128xf32>
    %44 = vector.shape_cast %41 : vector<1x128xf32> to vector<1x1x128xf32>
    tpu.vector_store %arg6[%c2_29, %c0_30, %c0_31], %44 {strides = array<i32>} : memref<4x1x128xf32, #tpu.memory_space<vmem>>, vector<1x1x128xf32>,
    %c3 = arith.constant 3 : index
    %c0_32 = arith.constant 0 : index
    %c0_33 = arith.constant 0 : index
    %45 = vector.load %arg2[%c3, %c0_32, %c0_33] : memref<4x32x128xf32, #tpu.memory_space<vmem>>, vector<1x32x128xf32>
    %46 = vector.shape_cast %45 : vector<1x32x128xf32> to vector<32x128xf32>
    %cst_34 = arith.constant dense<0.000000e+00> : vector<32x128xf32>
    %47 = tpu.matmul %0, %46, %cst_34 {dimension_numbers = #tpu.dot_dimension_numbers<[1], [0], [0], [1], [0, 0, 1, 1], [], []>} : vector<32x32xf32>, vector<32x128xf32>, vector<32x128xf32> -> vector<32x128xf32>
    %48 = vector.broadcast %1 : vector<32x1xf32> to vector<32x128xf32>
    %49 = arith.addf %47, %48 : vector<32x128xf32>
    %cst_35 = arith.constant 0.000000e+00 : f32
    %50 = vector.broadcast %cst_35 : f32 to vector<32x128xf32>
    %51 = arith.cmpf oge, %49, %50 : vector<32x128xf32>
    %cst_36 = arith.constant 2.000000e-01 : f32
    %52 = vector.broadcast %cst_36 : f32 to vector<32x128xf32>
    %53 = arith.mulf %52, %49 : vector<32x128xf32>
    %54 = arith.select %51, %49, %53 : vector<32x128xi1>, vector<32x128xf32>
    %cst_37 = arith.constant dense<0.000000e+00> : vector<1x128xf32>
    %55 = tpu.matmul %2, %54, %cst_37 {dimension_numbers = #tpu.dot_dimension_numbers<[1], [0], [0], [1], [0, 0, 1, 1], [], []>} : vector<1x32xf32>, vector<32x128xf32>, vector<1x128xf32> -> vector<1x128xf32>
    %c3_38 = arith.constant 3 : index
    %c0_39 = arith.constant 0 : index
    %c0_40 = arith.constant 0 : index
    %56 = vector.load %arg6[%c3_38, %c0_39, %c0_40] : memref<4x1x128xf32, #tpu.memory_space<vmem>>, vector<1x1x128xf32>
    %57 = vector.shape_cast %56 : vector<1x1x128xf32> to vector<1x128xf32>
    %58 = vector.shape_cast %55 : vector<1x128xf32> to vector<1x1x128xf32>
    tpu.vector_store %arg6[%c3_38, %c0_39, %c0_40], %58 {strides = array<i32>} : memref<4x1x128xf32, #tpu.memory_space<vmem>>, vector<1x1x128xf32>,
    return
  }
  func.func @transform_0(%arg0: i32, %arg1: i32) -> (i32, i32, i32) {
    %c0_i32 = arith.constant 0 : i32
    %c0_i32_0 = arith.constant 0 : i32
    return %arg1, %c0_i32, %arg0 : i32, i32, i32
  }
  func.func @transform_1(%arg0: i32, %arg1: i32) -> (i32, i32) {
    %c0_i32 = arith.constant 0 : i32
    %c0_i32_0 = arith.constant 0 : i32
    %c0_i32_1 = arith.constant 0 : i32
    return %c0_i32, %c0_i32_0 : i32, i32
  }
  func.func @transform_2(%arg0: i32, %arg1: i32) -> (i32, i32) {
    %c0_i32 = arith.constant 0 : i32
    %c0_i32_0 = arith.constant 0 : i32
    %c0_i32_1 = arith.constant 0 : i32
    return %c0_i32, %c0_i32_0 : i32, i32
  }
  func.func @transform_3(%arg0: i32, %arg1: i32) -> (i32, i32) {
    %c0_i32 = arith.constant 0 : i32
    %c0_i32_0 = arith.constant 0 : i32
    %c0_i32_1 = arith.constant 0 : i32
    return %c0_i32, %c0_i32_0 : i32, i32
  }
  func.func @transform_4(%arg0: i32, %arg1: i32) -> (i32, i32, i32) {
    %c0_i32 = arith.constant 0 : i32
    %c0_i32_0 = arith.constant 0 : i32
    return %arg1, %c0_i32, %arg0 : i32, i32, i32
  }
}

</mosaic_0001>

<llo_original>
// kernel: tpu_custom_call.1
$region0: #{tpu_custom_call.1}
  #allocation0 [shape = 'u32[]', space=smem, size = 0x4, offset = 0x4, fixed_abs, tag = 'smem constant byte address 0x4 - core index']
  #allocation1 [shape = 'u32[144,128]{1,0:T(1,128)}', space=vmem, size = 0x12000, scoped, tag = 'internal scratch']
  %s0 = inlined_call_operand.hbm [shape: f32[4,32,128], index: 0, kind: input, shape index: {}]
  %s1 = inlined_call_operand.vmem [shape: f32[32,32], index: 1, kind: input, shape index: {}]
  %s2 = inlined_call_operand.vmem [shape: f32[32,1], index: 2, kind: input, shape index: {}]
  %s3 = inlined_call_operand.vmem [shape: f32[1,32], index: 3, kind: input, shape index: {}]
  %s4 = inlined_call_operand.hbm [shape: f32[4,1,128], index: 4, kind: output, shape index: {}]
  %s5 = sld [smem:[#allocation0]]
  $region30: #{tpu_custom_call.1} parent=0
    _
  %s7 = ssub.s32 1, %s5
  %s8 = scalar_select 0, %s7, %s5
  $region1: #{tpu_custom_call.1} parent=0
    #allocation2 [shape = 'u8[65536]{0}', space=vmem, size = 0x10000, scoped, tag = 'input window, operand 0, single buffered']
    #allocation3 [shape = 's32[1]{0}', space=sflag, size = 0x4, scoped, tag = 'scoped memory for tpu_custom_call.1']
    #allocation4 [shape = 's32[1]{0}', space=sflag, size = 0x4, scoped, tag = 'scoped memory for tpu_custom_call.1']
    #allocation5 [shape = 'u8[2048]{0}', space=vmem, size = 0x800, scoped, tag = 'output window, operand 0, single buffered']
    %9 = vsyncpa [#allocation3], 0
    %10 = vsyncpa [#allocation4], 0
    // Predicated region
    $region2: #{tpu_custom_call.1} parent=1 // pred_check
      _
    $region3: #{tpu_custom_call.1} parent=1 // pred_check_branch
      %12 = sbr.rel (0) target = $region5
    $region4: #{tpu_custom_call.1} parent=1 // pred_region
      %s14 = ssub.s32 2048, 2048
      %15 = vsyncadd [#allocation3], %s14
      %s16 = sshll.u32 [#allocation2], 4
      %s17 = int_to_ptr.vmem [resolvable:$true] %s16
      %22 = dma.hbm_to_vmem [thread:$0]  %s0, 2048, %s17, [#allocation3], 128, 128, 8
    $region5: #{tpu_custom_call.1} parent=1 // pred_fallthru
      _
    // Predicated region
    $region6: #{tpu_custom_call.1} parent=1 // pred_check
      _
    $region7: #{tpu_custom_call.1} parent=1 // pred_check_branch
      %24 = sbr.rel (0) target = $region9
    $region8: #{tpu_custom_call.1} parent=1 // pred_region
      _
    $region9: #{tpu_custom_call.1} parent=1 // pred_fallthru
      _
    // Predicated region
    $region10: #{tpu_custom_call.1} parent=1 // pred_check
      _
    $region11: #{tpu_custom_call.1} parent=1 // pred_check_branch
      %26 = sbr.rel (0) target = $region13
    $region12: #{tpu_custom_call.1} parent=1 // pred_region
      _
    $region13: #{tpu_custom_call.1} parent=1 // pred_fallthru
      _
    // Predicated region
    $region14: #{tpu_custom_call.1} parent=1 // pred_check
      _
    $region15: #{tpu_custom_call.1} parent=1 // pred_check_branch
      %28 = sbr.rel (0) target = $region17
    $region16: #{tpu_custom_call.1} parent=1 // pred_region
      _
    $region17: #{tpu_custom_call.1} parent=1 // pred_fallthru
      _
    // Predicated region
    $region18: #{tpu_custom_call.1} parent=1 // pred_check
      _
    $region19: #{tpu_custom_call.1} parent=1 // pred_check_branch
      %30 = sbr.rel (0) target = $region21
    $region20: #{tpu_custom_call.1} parent=1 // pred_region
      %31 = dma.done [#allocation3], 2048
    $region21: #{tpu_custom_call.1} parent=1 // pred_fallthru
      _
    %v32 = vld [vmem:[%s1] sm:$0xff]
    %v33 = vld [vmem:[%s1 + $0x8] sm:$0xff]
    %v34 = vld [vmem:[%s1 + $0x10] sm:$0xff]
    %v35 = vld [vmem:[%s1 + $0x18] sm:$0xff]
    %v36 = vld [vmem:[%s2] sm:$0xff]
    %v37 = vld [vmem:[%s2 + $0x8] sm:$0xff]
    %v38 = vld [vmem:[%s2 + $0x10] sm:$0xff]
    %v39 = vld [vmem:[%s2 + $0x18] sm:$0xff]
    %v40 = vld [vmem:[%s3] sm:$0x1]
    %v41 = vld [vmem:[#allocation2] sm:$0xff]
    %v42 = vld [vmem:[#allocation2 + $0x8] sm:$0xff]
    %v43 = vld [vmem:[#allocation2 + $0x10] sm:$0xff]
    %v44 = vld [vmem:[#allocation2 + $0x18] sm:$0xff]
    %46 = vset.pattern.permute.xlu0 0
    %47 = vperm.xlu0 %46, %v36
    %v48 = vpop.permute.xlu0 %47
    %51 = vset.pattern.permute.xlu0 0
    %52 = vperm.xlu0 %51, %v37
    %v53 = vpop.permute.xlu0 %52
    %56 = vset.pattern.permute.xlu0 0
    %57 = vperm.xlu0 %56, %v38
    %v58 = vpop.permute.xlu0 %57
    %61 = vset.pattern.permute.xlu0 0
    %62 = vperm.xlu0 %61, %v39
    %v63 = vpop.permute.xlu0 %62
    %vm65 = vcmask 261120
    %v67 = vsel %vm65, %v32, 0
    %v70 = vsel %vm65, %v33, 0
    %v73 = vsel %vm65, %v34, 0
    %v76 = vsel %vm65, %v35, 0
    %78 = vmatprep.subr.mxu0 0.0
    %79 = vmatpush1.msra.mxu0 %v41
    %80 = vmatprep.subr.mxu0 0.0
    %81 = vmatpush1.msra.mxu0 %v42
    %82 = vmatprep.subr.mxu0 0.0
    %83 = vmatpush1.msra.mxu0 %v43
    %84 = vmatprep.subr.mxu0 0.0
    %85 = vmatpush1.msra.mxu0 %v44
    %86 = vmatprep.subr.mxu0 0.0
    %87 = vmatpush1.msra.mxu0 0.0
    %88 = vmatprep.subr.mxu0 0.0
    %89 = vmatpush1.msra.mxu0 0.0
    %90 = vmatprep.subr.mxu0 0.0
    %91 = vmatpush1.msra.mxu0 0.0
    %92 = vmatprep.subr.mxu0 0.0
    %93 = vmatpush1.msra.mxu0 0.0
    %94 = vmatprep.subr.mxu0 0.0
    %95 = vmatpush1.msra.mxu0 0.0
    %96 = vmatprep.subr.mxu0 0.0
    %97 = vmatpush1.msra.mxu0 0.0
    %98 = vmatprep.subr.mxu0 0.0
    %99 = vmatpush1.msra.mxu0 0.0
    %100 = vmatprep.subr.mxu0 0.0
    %101 = vmatpush1.msra.mxu0 0.0
    %102 = vmatprep.subr.mxu0 0.0
    %103 = vmatpush1.msra.mxu0 0.0
    %104 = vmatprep.subr.mxu0 0.0
    %105 = vmatpush1.msra.mxu0 0.0
    %106 = vmatprep.subr.mxu0 0.0
    %107 = vmatpush1.msra.mxu0 0.0
    %108 = vmatprep.subr.mxu0 0.0
    %109 = vmatpush1.msra.mxu0 0.0
    %110 = vmatprep.subr.mxu0 0.0
    %111 = vmatpush1.msra.mxu0 0.0
    %112 = vmatprep.subr.mxu0 0.0
    %113 = vmatpush1.msra.mxu0 0.0
    %114 = vmatprep.subr.mxu0 0.0
    %115 = vmatpush1.msra.mxu0 0.0
    %116 = vmatprep.subr.mxu0 0.0
    %117 = vmatpush1.msra.mxu0 0.0
    %118 = vmatprep.subr.mxu0 0.0
    %119 = vmatpush1.msra.mxu0 0.0
    %120 = vmatprep.subr.mxu0 0.0
    %121 = vmatpush1.msra.mxu0 0.0
    %122 = vmatprep.subr.mxu0 0.0
    %123 = vmatpush1.msra.mxu0 0.0
    %124 = vmatprep.subr.mxu0 0.0
    %125 = vmatpush1.msra.mxu0 0.0
    %126 = vmatprep.subr.mxu0 0.0
    %127 = vmatpush1.msra.mxu0 0.0
    %128 = vmatprep.subr.mxu0 0.0
    %129 = vmatpush1.msra.mxu0 0.0
    %130 = vmatprep.subr.mxu0 0.0
    %131 = vmatpush1.msra.mxu0 0.0
    %132 = vmatprep.subr.mxu0 0.0
    %133 = vmatpush1.msra.mxu0 0.0
    %134 = vmatprep.subr.mxu0 0.0
    %135 = vmatpush1.msra.mxu0 0.0
    %136 = vmatprep.subr.mxu0 0.0
    %137 = vmatpush1.msra.mxu0 0.0
    %138 = vmatprep.subr.mxu0 0.0
    %139 = vmatpush1.msra.mxu0 0.0
    %140 = vmatprep.subr.mxu0 0.0
    %141 = vmatpush1.msra.mxu0 0.0
    %142 = vmatprep.mubr.f32.mxu0 0.0
    %143 = vmatmul.mubr.f32.gmra.mrb[0].mxu0 %v67
    %v144 = vpop.f32.mrb[0].mxu0
    %v145 = vadd.f32 %v48, %v144
    %v146 = vpop.f32.mrb[0].mxu0
    %147 = vmatprep.mubr.f32.mxu0 0.0
    %148 = vmatmul.mubr.f32.gmra.mrb[0].mxu0 %v70
    %v149 = vpop.f32.mrb[0].mxu0
    %v150 = vadd.f32 %v53, %v149
    %v151 = vpop.f32.mrb[0].mxu0
    %152 = vmatprep.mubr.f32.mxu0 0.0
    %153 = vmatmul.mubr.f32.gmra.mrb[0].mxu0 %v73
    %v154 = vpop.f32.mrb[0].mxu0
    %v155 = vadd.f32 %v58, %v154
    %v156 = vpop.f32.mrb[0].mxu0
    %157 = vmatprep.mubr.f32.mxu0 0.0
    %158 = vmatmul.mubr.f32.gmra.mrb[0].mxu0 %v76
    %v159 = vpop.f32.mrb[0].mxu0
    %v160 = vadd.f32 %v63, %v159
    %v161 = vpop.f32.mrb[0].mxu0
    %162 = vdwg.mxu0
    %vm163 = vcmp.ge.f32.partialorder %v145, 0.0
    %vm164 = vcmp.ge.f32.partialorder %v150, 0.0
    %vm165 = vcmp.ge.f32.partialorder %v155, 0.0
    %vm166 = vcmp.ge.f32.partialorder %v160, 0.0
    %v167 = vmul.f32 %v145, 0.2
    %v168 = vmul.f32 %v150, 0.2
    %v169 = vmul.f32 %v155, 0.2
    %v170 = vmul.f32 %v160, 0.2
    %v171 = vsel %vm163, %v145, %v167
    %v172 = vsel %vm164, %v150, %v168
    %v173 = vsel %vm165, %v155, %v169
    %v174 = vsel %vm166, %v160, %v170
    %v176 = vsel %vm65, %v40, 0
    %178 = vmatprep.subr.mxu0 0.0
    %179 = vmatpush1.msra.mxu0 %v171
    %180 = vmatprep.subr.mxu0 0.0
    %181 = vmatpush1.msra.mxu0 %v172
    %182 = vmatprep.subr.mxu0 0.0
    %183 = vmatpush1.msra.mxu0 %v173
    %184 = vmatprep.subr.mxu0 0.0
    %185 = vmatpush1.msra.mxu0 %v174
    %186 = vmatprep.subr.mxu0 0.0
    %187 = vmatpush1.msra.mxu0 0.0
    %188 = vmatprep.subr.mxu0 0.0
    %189 = vmatpush1.msra.mxu0 0.0
    %190 = vmatprep.subr.mxu0 0.0
    %191 = vmatpush1.msra.mxu0 0.0
    %192 = vmatprep.subr.mxu0 0.0
    %193 = vmatpush1.msra.mxu0 0.0
    %194 = vmatprep.subr.mxu0 0.0
    %195 = vmatpush1.msra.mxu0 0.0
    %196 = vmatprep.subr.mxu0 0.0
    %197 = vmatpush1.msra.mxu0 0.0
    %198 = vmatprep.subr.mxu0 0.0
    %199 = vmatpush1.msra.mxu0 0.0
    %200 = vmatprep.subr.mxu0 0.0
    %201 = vmatpush1.msra.mxu0 0.0
    %202 = vmatprep.subr.mxu0 0.0
    %203 = vmatpush1.msra.mxu0 0.0
    %204 = vmatprep.subr.mxu0 0.0
    %205 = vmatpush1.msra.mxu0 0.0
    %206 = vmatprep.subr.mxu0 0.0
    %207 = vmatpush1.msra.mxu0 0.0
    %208 = vmatprep.subr.mxu0 0.0
    %209 = vmatpush1.msra.mxu0 0.0
    %210 = vmatprep.subr.mxu0 0.0
    %211 = vmatpush1.msra.mxu0 0.0
    %212 = vmatprep.subr.mxu0 0.0
    %213 = vmatpush1.msra.mxu0 0.0
    %214 = vmatprep.subr.mxu0 0.0
    %215 = vmatpush1.msra.mxu0 0.0
    %216 = vmatprep.subr.mxu0 0.0
    %217 = vmatpush1.msra.mxu0 0.0
    %218 = vmatprep.subr.mxu0 0.0
    %219 = vmatpush1.msra.mxu0 0.0
    %220 = vmatprep.subr.mxu0 0.0
    %221 = vmatpush1.msra.mxu0 0.0
    %222 = vmatprep.subr.mxu0 0.0
    %223 = vmatpush1.msra.mxu0 0.0
    %224 = vmatprep.subr.mxu0 0.0
    %225 = vmatpush1.msra.mxu0 0.0
    %226 = vmatprep.subr.mxu0 0.0
    %227 = vmatpush1.msra.mxu0 0.0
    %228 = vmatprep.subr.mxu0 0.0
    %229 = vmatpush1.msra.mxu0 0.0
    %230 = vmatprep.subr.mxu0 0.0
    %231 = vmatpush1.msra.mxu0 0.0
    %232 = vmatprep.subr.mxu0 0.0
    %233 = vmatpush1.msra.mxu0 0.0
    %234 = vmatprep.subr.mxu0 0.0
    %235 = vmatpush1.msra.mxu0 0.0
    %236 = vmatprep.subr.mxu0 0.0
    %237 = vmatpush1.msra.mxu0 0.0
    %238 = vmatprep.subr.mxu0 0.0
    %239 = vmatpush1.msra.mxu0 0.0
    %240 = vmatprep.subr.mxu0 0.0
    %241 = vmatpush1.msra.mxu0 0.0
    %242 = vmatprep.mubr.f32.mxu0 0.0
    %243 = vmatmul.mubr.f32.gmra.mrb[0].mxu0 %v176
    %v244 = vpop.f32.mrb[0].mxu0
    %v245 = vadd.f32 0.0, %v244
    %v246 = vpop.f32.mrb[0].mxu0
    %247 = vdwg.mxu0
    %248 = vst [vmem:[#allocation5] sm:$0x1] %v245
    %s249 = scalar_lea.vmem [#allocation2], 32
    %v250 = vld [vmem:[%s249] sm:$0xff]
    %v251 = vld [vmem:[%s249 + $0x8] sm:$0xff]
    %v252 = vld [vmem:[%s249 + $0x10] sm:$0xff]
    %v253 = vld [vmem:[%s249 + $0x18] sm:$0xff]
    %254 = vmatprep.subr.mxu0 0.0
    %255 = vmatpush1.msra.mxu0 %v250
    %256 = vmatprep.subr.mxu0 0.0
    %257 = vmatpush1.msra.mxu0 %v251
    %258 = vmatprep.subr.mxu0 0.0
    %259 = vmatpush1.msra.mxu0 %v252
    %260 = vmatprep.subr.mxu0 0.0
    %261 = vmatpush1.msra.mxu0 %v253
    %262 = vmatprep.subr.mxu0 0.0
    %263 = vmatpush1.msra.mxu0 0.0
    %264 = vmatprep.subr.mxu0 0.0
    %265 = vmatpush1.msra.mxu0 0.0
    %266 = vmatprep.subr.mxu0 0.0
    %267 = vmatpush1.msra.mxu0 0.0
    %268 = vmatprep.subr.mxu0 0.0
    %269 = vmatpush1.msra.mxu0 0.0
    %270 = vmatprep.subr.mxu0 0.0
    %271 = vmatpush1.msra.mxu0 0.0
    %272 = vmatprep.subr.mxu0 0.0
    %273 = vmatpush1.msra.mxu0 0.0
    %274 = vmatprep.subr.mxu0 0.0
    %275 = vmatpush1.msra.mxu0 0.0
    %276 = vmatprep.subr.mxu0 0.0
    %277 = vmatpush1.msra.mxu0 0.0
    %278 = vmatprep.subr.mxu0 0.0
    %279 = vmatpush1.msra.mxu0 0.0
    %280 = vmatprep.subr.mxu0 0.0
    %281 = vmatpush1.msra.mxu0 0.0
    %282 = vmatprep.subr.mxu0 0.0
    %283 = vmatpush1.msra.mxu0 0.0
    %284 = vmatprep.subr.mxu0 0.0
    %285 = vmatpush1.msra.mxu0 0.0
    %286 = vmatprep.subr.mxu0 0.0
    %287 = vmatpush1.msra.mxu0 0.0
    %288 = vmatprep.subr.mxu0 0.0
    %289 = vmatpush1.msra.mxu0 0.0
    %290 = vmatprep.subr.mxu0 0.0
    %291 = vmatpush1.msra.mxu0 0.0
    %292 = vmatprep.subr.mxu0 0.0
    %293 = vmatpush1.msra.mxu0 0.0
    %294 = vmatprep.subr.mxu0 0.0
    %295 = vmatpush1.msra.mxu0 0.0
    %296 = vmatprep.subr.mxu0 0.0
    %297 = vmatpush1.msra.mxu0 0.0
    %298 = vmatprep.subr.mxu0 0.0
    %299 = vmatpush1.msra.mxu0 0.0
    %300 = vmatprep.subr.mxu0 0.0
    %301 = vmatpush1.msra.mxu0 0.0
    %302 = vmatprep.subr.mxu0 0.0
    %303 = vmatpush1.msra.mxu0 0.0
    %304 = vmatprep.subr.mxu0 0.0
    %305 = vmatpush1.msra.mxu0 0.0
    %306 = vmatprep.subr.mxu0 0.0
    %307 = vmatpush1.msra.mxu0 0.0
    %308 = vmatprep.subr.mxu0 0.0
    %309 = vmatpush1.msra.mxu0 0.0
    %310 = vmatprep.subr.mxu0 0.0
    %311 = vmatpush1.msra.mxu0 0.0
    %312 = vmatprep.subr.mxu0 0.0
    %313 = vmatpush1.msra.mxu0 0.0
    %314 = vmatprep.subr.mxu0 0.0
    %315 = vmatpush1.msra.mxu0 0.0
    %316 = vmatprep.subr.mxu0 0.0
    %317 = vmatpush1.msra.mxu0 0.0
    %318 = vmatprep.mubr.f32.mxu0 0.0
    %319 = vmatmul.mubr.f32.gmra.mrb[0].mxu0 %v67
    %v320 = vpop.f32.mrb[0].mxu0
    %v321 = vadd.f32 %v48, %v320
    %v322 = vpop.f32.mrb[0].mxu0
    %323 = vmatprep.mubr.f32.mxu0 0.0
    %324 = vmatmul.mubr.f32.gmra.mrb[0].mxu0 %v70
    %v325 = vpop.f32.mrb[0].mxu0
    %v326 = vadd.f32 %v53, %v325
    %v327 = vpop.f32.mrb[0].mxu0
    %328 = vmatprep.mubr.f32.mxu0 0.0
    %329 = vmatmul.mubr.f32.gmra.mrb[0].mxu0 %v73
    %v330 = vpop.f32.mrb[0].mxu0
    %v331 = vadd.f32 %v58, %v330
    %v332 = vpop.f32.mrb[0].mxu0
    %333 = vmatprep.mubr.f32.mxu0 0.0
    %334 = vmatmul.mubr.f32.gmra.mrb[0].mxu0 %v76
    %v335 = vpop.f32.mrb[0].mxu0
    %v336 = vadd.f32 %v63, %v335
    %v337 = vpop.f32.mrb[0].mxu0
    %338 = vdwg.mxu0
    %vm339 = vcmp.ge.f32.partialorder %v321, 0.0
    %vm340 = vcmp.ge.f32.partialorder %v326, 0.0
    %vm341 = vcmp.ge.f32.partialorder %v331, 0.0
    %vm342 = vcmp.ge.f32.partialorder %v336, 0.0
    %v343 = vmul.f32 %v321, 0.2
    %v344 = vmul.f32 %v326, 0.2
    %v345 = vmul.f32 %v331, 0.2
    %v346 = vmul.f32 %v336, 0.2
    %v347 = vsel %vm339, %v321, %v343
    %v348 = vsel %vm340, %v326, %v344
    %v349 = vsel %vm341, %v331, %v345
    %v350 = vsel %vm342, %v336, %v346
    %351 = vmatprep.subr.mxu0 0.0
    %352 = vmatpush1.msra.mxu0 %v347
    %353 = vmatprep.subr.mxu0 0.0
    %354 = vmatpush1.msra.mxu0 %v348
    %355 = vmatprep.subr.mxu0 0.0
    %356 = vmatpush1.msra.mxu0 %v349
    %357 = vmatprep.subr.mxu0 0.0
    %358 = vmatpush1.msra.mxu0 %v350
    %359 = vmatprep.subr.mxu0 0.0
    %360 = vmatpush1.msra.mxu0 0.0
    %361 = vmatprep.subr.mxu0 0.0
    %362 = vmatpush1.msra.mxu0 0.0
    %363 = vmatprep.subr.mxu0 0.0
    %364 = vmatpush1.msra.mxu0 0.0
    %365 = vmatprep.subr.mxu0 0.0
    %366 = vmatpush1.msra.mxu0 0.0
    %367 = vmatprep.subr.mxu0 0.0
    %368 = vmatpush1.msra.mxu0 0.0
    %369 = vmatprep.subr.mxu0 0.0
    %370 = vmatpush1.msra.mxu0 0.0
    %371 = vmatprep.subr.mxu0 0.0
    %372 = vmatpush1.msra.mxu0 0.0
    %373 = vmatprep.subr.mxu0 0.0
    %374 = vmatpush1.msra.mxu0 0.0
    %375 = vmatprep.subr.mxu0 0.0
    %376 = vmatpush1.msra.mxu0 0.0
    %377 = vmatprep.subr.mxu0 0.0
    %378 = vmatpush1.msra.mxu0 0.0
    %379 = vmatprep.subr.mxu0 0.0
    %380 = vmatpush1.msra.mxu0 0.0
    %381 = vmatprep.subr.mxu0 0.0
    %382 = vmatpush1.msra.mxu0 0.0
    %383 = vmatprep.subr.mxu0 0.0
    %384 = vmatpush1.msra.mxu0 0.0
    %385 = vmatprep.subr.mxu0 0.0
    %386 = vmatpush1.msra.mxu0 0.0
    %387 = vmatprep.subr.mxu0 0.0
    %388 = vmatpush1.msra.mxu0 0.0
    %389 = vmatprep.subr.mxu0 0.0
    %390 = vmatpush1.msra.mxu0 0.0
    %391 = vmatprep.subr.mxu0 0.0
    %392 = vmatpush1.msra.mxu0 0.0
    %393 = vmatprep.subr.mxu0 0.0
    %394 = vmatpush1.msra.mxu0 0.0
    %395 = vmatprep.subr.mxu0 0.0
    %396 = vmatpush1.msra.mxu0 0.0
    %397 = vmatprep.subr.mxu0 0.0
    %398 = vmatpush1.msra.mxu0 0.0
    %399 = vmatprep.subr.mxu0 0.0
    %400 = vmatpush1.msra.mxu0 0.0
    %401 = vmatprep.subr.mxu0 0.0
    %402 = vmatpush1.msra.mxu0 0.0
    %403 = vmatprep.subr.mxu0 0.0
    %404 = vmatpush1.msra.mxu0 0.0
    %405 = vmatprep.subr.mxu0 0.0
    %406 = vmatpush1.msra.mxu0 0.0
    %407 = vmatprep.subr.mxu0 0.0
    %408 = vmatpush1.msra.mxu0 0.0
    %409 = vmatprep.subr.mxu0 0.0
    %410 = vmatpush1.msra.mxu0 0.0
    %411 = vmatprep.subr.mxu0 0.0
    %412 = vmatpush1.msra.mxu0 0.0
    %413 = vmatprep.subr.mxu0 0.0
    %414 = vmatpush1.msra.mxu0 0.0
    %415 = vmatprep.mubr.f32.mxu0 0.0
    %416 = vmatmul.mubr.f32.gmra.mrb[0].mxu0 %v176
    %v417 = vpop.f32.mrb[0].mxu0
    %v418 = vadd.f32 0.0, %v417
    %v419 = vpop.f32.mrb[0].mxu0
    %420 = vdwg.mxu0
    %s421 = scalar_lea.vmem [#allocation5], 1
    %422 = vst [vmem:[%s421] sm:$0x1] %v418
    %s423 = scalar_lea.vmem [#allocation2], 64
    %v424 = vld [vmem:[%s423] sm:$0xff]
    %v425 = vld [vmem:[%s423 + $0x8] sm:$0xff]
    %v426 = vld [vmem:[%s423 + $0x10] sm:$0xff]
    %v427 = vld [vmem:[%s423 + $0x18] sm:$0xff]
    %428 = vmatprep.subr.mxu0 0.0
    %429 = vmatpush1.msra.mxu0 %v424
    %430 = vmatprep.subr.mxu0 0.0
    %431 = vmatpush1.msra.mxu0 %v425
    %432 = vmatprep.subr.mxu0 0.0
    %433 = vmatpush1.msra.mxu0 %v426
    %434 = vmatprep.subr.mxu0 0.0
    %435 = vmatpush1.msra.mxu0 %v427
    %436 = vmatprep.subr.mxu0 0.0
    %437 = vmatpush1.msra.mxu0 0.0
    %438 = vmatprep.subr.mxu0 0.0
    %439 = vmatpush1.msra.mxu0 0.0
    %440 = vmatprep.subr.mxu0 0.0
    %441 = vmatpush1.msra.mxu0 0.0
    %442 = vmatprep.subr.mxu0 0.0
    %443 = vmatpush1.msra.mxu0 0.0
    %444 = vmatprep.subr.mxu0 0.0
    %445 = vmatpush1.msra.mxu0 0.0
    %446 = vmatprep.subr.mxu0 0.0
    %447 = vmatpush1.msra.mxu0 0.0
    %448 = vmatprep.subr.mxu0 0.0
    %449 = vmatpush1.msra.mxu0 0.0
    %450 = vmatprep.subr.mxu0 0.0
    %451 = vmatpush1.msra.mxu0 0.0
    %452 = vmatprep.subr.mxu0 0.0
    %453 = vmatpush1.msra.mxu0 0.0
    %454 = vmatprep.subr.mxu0 0.0
    %455 = vmatpush1.msra.mxu0 0.0
    %456 = vmatprep.subr.mxu0 0.0
    %457 = vmatpush1.msra.mxu0 0.0
    %458 = vmatprep.subr.mxu0 0.0
    %459 = vmatpush1.msra.mxu0 0.0
    %460 = vmatprep.subr.mxu0 0.0
    %461 = vmatpush1.msra.mxu0 0.0
    %462 = vmatprep.subr.mxu0 0.0
    %463 = vmatpush1.msra.mxu0 0.0
    %464 = vmatprep.subr.mxu0 0.0
    %465 = vmatpush1.msra.mxu0 0.0
    %466 = vmatprep.subr.mxu0 0.0
    %467 = vmatpush1.msra.mxu0 0.0
    %468 = vmatprep.subr.mxu0 0.0
    %469 = vmatpush1.msra.mxu0 0.0
    %470 = vmatprep.subr.mxu0 0.0
    %471 = vmatpush1.msra.mxu0 0.0
    %472 = vmatprep.subr.mxu0 0.0
    %473 = vmatpush1.msra.mxu0 0.0
    %474 = vmatprep.subr.mxu0 0.0
    %475 = vmatpush1.msra.mxu0 0.0
    %476 = vmatprep.subr.mxu0 0.0
    %477 = vmatpush1.msra.mxu0 0.0
    %478 = vmatprep.subr.mxu0 0.0
    %479 = vmatpush1.msra.mxu0 0.0
    %480 = vmatprep.subr.mxu0 0.0
    %481 = vmatpush1.msra.mxu0 0.0
    %482 = vmatprep.subr.mxu0 0.0
    %483 = vmatpush1.msra.mxu0 0.0
    %484 = vmatprep.subr.mxu0 0.0
    %485 = vmatpush1.msra.mxu0 0.0
    %486 = vmatprep.subr.mxu0 0.0
    %487 = vmatpush1.msra.mxu0 0.0
    %488 = vmatprep.subr.mxu0 0.0
    %489 = vmatpush1.msra.mxu0 0.0
    %490 = vmatprep.subr.mxu0 0.0
    %491 = vmatpush1.msra.mxu0 0.0
    %492 = vmatprep.mubr.f32.mxu0 0.0
    %493 = vmatmul.mubr.f32.gmra.mrb[0].mxu0 %v67
    %v494 = vpop.f32.mrb[0].mxu0
    %v495 = vadd.f32 %v48, %v494
    %v496 = vpop.f32.mrb[0].mxu0
    %497 = vmatprep.mubr.f32.mxu0 0.0
    %498 = vmatmul.mubr.f32.gmra.mrb[0].mxu0 %v70
    %v499 = vpop.f32.mrb[0].mxu0
    %v500 = vadd.f32 %v53, %v499
    %v501 = vpop.f32.mrb[0].mxu0
    %502 = vmatprep.mubr.f32.mxu0 0.0
    %503 = vmatmul.mubr.f32.gmra.mrb[0].mxu0 %v73
    %v504 = vpop.f32.mrb[0].mxu0
    %v505 = vadd.f32 %v58, %v504
    %v506 = vpop.f32.mrb[0].mxu0
    %507 = vmatprep.mubr.f32.mxu0 0.0
    %508 = vmatmul.mubr.f32.gmra.mrb[0].mxu0 %v76
    %v509 = vpop.f32.mrb[0].mxu0
    %v510 = vadd.f32 %v63, %v509
    %v511 = vpop.f32.mrb[0].mxu0
    %512 = vdwg.mxu0
    %vm513 = vcmp.ge.f32.partialorder %v495, 0.0
    %vm514 = vcmp.ge.f32.partialorder %v500, 0.0
    %vm515 = vcmp.ge.f32.partialorder %v505, 0.0
    %vm516 = vcmp.ge.f32.partialorder %v510, 0.0
    %v517 = vmul.f32 %v495, 0.2
    %v518 = vmul.f32 %v500, 0.2
    %v519 = vmul.f32 %v505, 0.2
    %v520 = vmul.f32 %v510, 0.2
    %v521 = vsel %vm513, %v495, %v517
    %v522 = vsel %vm514, %v500, %v518
    %v523 = vsel %vm515, %v505, %v519
    %v524 = vsel %vm516, %v510, %v520
    %525 = vmatprep.subr.mxu0 0.0
    %526 = vmatpush1.msra.mxu0 %v521
    %527 = vmatprep.subr.mxu0 0.0
    %528 = vmatpush1.msra.mxu0 %v522
    %529 = vmatprep.subr.mxu0 0.0
    %530 = vmatpush1.msra.mxu0 %v523
    %531 = vmatprep.subr.mxu0 0.0
    %532 = vmatpush1.msra.mxu0 %v524
    %533 = vmatprep.subr.mxu0 0.0
    %534 = vmatpush1.msra.mxu0 0.0
    %535 = vmatprep.subr.mxu0 0.0
    %536 = vmatpush1.msra.mxu0 0.0
    %537 = vmatprep.subr.mxu0 0.0
    %538 = vmatpush1.msra.mxu0 0.0
    %539 = vmatprep.subr.mxu0 0.0
    %540 = vmatpush1.msra.mxu0 0.0
    %541 = vmatprep.subr.mxu0 0.0
    %542 = vmatpush1.msra.mxu0 0.0
    %543 = vmatprep.subr.mxu0 0.0
    %544 = vmatpush1.msra.mxu0 0.0
    %545 = vmatprep.subr.mxu0 0.0
    %546 = vmatpush1.msra.mxu0 0.0
    %547 = vmatprep.subr.mxu0 0.0
    %548 = vmatpush1.msra.mxu0 0.0
    %549 = vmatprep.subr.mxu0 0.0
    %550 = vmatpush1.msra.mxu0 0.0
    %551 = vmatprep.subr.mxu0 0.0
    %552 = vmatpush1.msra.mxu0 0.0
    %553 = vmatprep.subr.mxu0 0.0
    %554 = vmatpush1.msra.mxu0 0.0
    %555 = vmatprep.subr.mxu0 0.0
    %556 = vmatpush1.msra.mxu0 0.0
    %557 = vmatprep.subr.mxu0 0.0
    %558 = vmatpush1.msra.mxu0 0.0
    %559 = vmatprep.subr.mxu0 0.0
    %560 = vmatpush1.msra.mxu0 0.0
    %561 = vmatprep.subr.mxu0 0.0
    %562 = vmatpush1.msra.mxu0 0.0
    %563 = vmatprep.subr.mxu0 0.0
    %564 = vmatpush1.msra.mxu0 0.0
    %565 = vmatprep.subr.mxu0 0.0
    %566 = vmatpush1.msra.mxu0 0.0
    %567 = vmatprep.subr.mxu0 0.0
    %568 = vmatpush1.msra.mxu0 0.0
    %569 = vmatprep.subr.mxu0 0.0
    %570 = vmatpush1.msra.mxu0 0.0
    %571 = vmatprep.subr.mxu0 0.0
    %572 = vmatpush1.msra.mxu0 0.0
    %573 = vmatprep.subr.mxu0 0.0
    %574 = vmatpush1.msra.mxu0 0.0
    %575 = vmatprep.subr.mxu0 0.0
    %576 = vmatpush1.msra.mxu0 0.0
    %577 = vmatprep.subr.mxu0 0.0
    %578 = vmatpush1.msra.mxu0 0.0
    %579 = vmatprep.subr.mxu0 0.0
    %580 = vmatpush1.msra.mxu0 0.0
    %581 = vmatprep.subr.mxu0 0.0
    %582 = vmatpush1.msra.mxu0 0.0
    %583 = vmatprep.subr.mxu0 0.0
    %584 = vmatpush1.msra.mxu0 0.0
    %585 = vmatprep.subr.mxu0 0.0
    %586 = vmatpush1.msra.mxu0 0.0
    %587 = vmatprep.subr.mxu0 0.0
    %588 = vmatpush1.msra.mxu0 0.0
    %589 = vmatprep.mubr.f32.mxu0 0.0
    %590 = vmatmul.mubr.f32.gmra.mrb[0].mxu0 %v176
    %v591 = vpop.f32.mrb[0].mxu0
    %v592 = vadd.f32 0.0, %v591
    %v593 = vpop.f32.mrb[0].mxu0
    %594 = vdwg.mxu0
    %s595 = scalar_lea.vmem [#allocation5], 2
    %596 = vst [vmem:[%s595] sm:$0x1] %v592
    %s597 = scalar_lea.vmem [#allocation2], 96
    %v598 = vld [vmem:[%s597] sm:$0xff]
    %v599 = vld [vmem:[%s597 + $0x8] sm:$0xff]
    %v600 = vld [vmem:[%s597 + $0x10] sm:$0xff]
    %v601 = vld [vmem:[%s597 + $0x18] sm:$0xff]
    %602 = vmatprep.subr.mxu0 0.0
    %603 = vmatpush1.msra.mxu0 %v598
    %604 = vmatprep.subr.mxu0 0.0
    %605 = vmatpush1.msra.mxu0 %v599
    %606 = vmatprep.subr.mxu0 0.0
    %607 = vmatpush1.msra.mxu0 %v600
    %608 = vmatprep.subr.mxu0 0.0
    %609 = vmatpush1.msra.mxu0 %v601
    %610 = vmatprep.subr.mxu0 0.0
    %611 = vmatpush1.msra.mxu0 0.0
    %612 = vmatprep.subr.mxu0 0.0
    %613 = vmatpush1.msra.mxu0 0.0
    %614 = vmatprep.subr.mxu0 0.0
    %615 = vmatpush1.msra.mxu0 0.0
    %616 = vmatprep.subr.mxu0 0.0
    %617 = vmatpush1.msra.mxu0 0.0
    %618 = vmatprep.subr.mxu0 0.0
    %619 = vmatpush1.msra.mxu0 0.0
    %620 = vmatprep.subr.mxu0 0.0
    %621 = vmatpush1.msra.mxu0 0.0
    %622 = vmatprep.subr.mxu0 0.0
    %623 = vmatpush1.msra.mxu0 0.0
    %624 = vmatprep.subr.mxu0 0.0
    %625 = vmatpush1.msra.mxu0 0.0
    %626 = vmatprep.subr.mxu0 0.0
    %627 = vmatpush1.msra.mxu0 0.0
    %628 = vmatprep.subr.mxu0 0.0
    %629 = vmatpush1.msra.mxu0 0.0
    %630 = vmatprep.subr.mxu0 0.0
    %631 = vmatpush1.msra.mxu0 0.0
    %632 = vmatprep.subr.mxu0 0.0
    %633 = vmatpush1.msra.mxu0 0.0
    %634 = vmatprep.subr.mxu0 0.0
    %635 = vmatpush1.msra.mxu0 0.0
    %636 = vmatprep.subr.mxu0 0.0
    %637 = vmatpush1.msra.mxu0 0.0
    %638 = vmatprep.subr.mxu0 0.0
    %639 = vmatpush1.msra.mxu0 0.0
    %640 = vmatprep.subr.mxu0 0.0
    %641 = vmatpush1.msra.mxu0 0.0
    %642 = vmatprep.subr.mxu0 0.0
    %643 = vmatpush1.msra.mxu0 0.0
    %644 = vmatprep.subr.mxu0 0.0
    %645 = vmatpush1.msra.mxu0 0.0
    %646 = vmatprep.subr.mxu0 0.0
    %647 = vmatpush1.msra.mxu0 0.0
    %648 = vmatprep.subr.mxu0 0.0
    %649 = vmatpush1.msra.mxu0 0.0
    %650 = vmatprep.subr.mxu0 0.0
    %651 = vmatpush1.msra.mxu0 0.0
    %652 = vmatprep.subr.mxu0 0.0
    %653 = vmatpush1.msra.mxu0 0.0
    %654 = vmatprep.subr.mxu0 0.0
    %655 = vmatpush1.msra.mxu0 0.0
    %656 = vmatprep.subr.mxu0 0.0
    %657 = vmatpush1.msra.mxu0 0.0
    %658 = vmatprep.subr.mxu0 0.0
    %659 = vmatpush1.msra.mxu0 0.0
    %660 = vmatprep.subr.mxu0 0.0
    %661 = vmatpush1.msra.mxu0 0.0
    %662 = vmatprep.subr.mxu0 0.0
    %663 = vmatpush1.msra.mxu0 0.0
    %664 = vmatprep.subr.mxu0 0.0
    %665 = vmatpush1.msra.mxu0 0.0
    %666 = vmatprep.mubr.f32.mxu0 0.0
    %667 = vmatmul.mubr.f32.gmra.mrb[0].mxu0 %v67
    %v668 = vpop.f32.mrb[0].mxu0
    %v669 = vadd.f32 %v48, %v668
    %v670 = vpop.f32.mrb[0].mxu0
    %671 = vmatprep.mubr.f32.mxu0 0.0
    %672 = vmatmul.mubr.f32.gmra.mrb[0].mxu0 %v70
    %v673 = vpop.f32.mrb[0].mxu0
    %v674 = vadd.f32 %v53, %v673
    %v675 = vpop.f32.mrb[0].mxu0
    %676 = vmatprep.mubr.f32.mxu0 0.0
    %677 = vmatmul.mubr.f32.gmra.mrb[0].mxu0 %v73
    %v678 = vpop.f32.mrb[0].mxu0
    %v679 = vadd.f32 %v58, %v678
    %v680 = vpop.f32.mrb[0].mxu0
    %681 = vmatprep.mubr.f32.mxu0 0.0
    %682 = vmatmul.mubr.f32.gmra.mrb[0].mxu0 %v76
    %v683 = vpop.f32.mrb[0].mxu0
    %v684 = vadd.f32 %v63, %v683
    %v685 = vpop.f32.mrb[0].mxu0
    %686 = vdwg.mxu0
    %vm687 = vcmp.ge.f32.partialorder %v669, 0.0
    %vm688 = vcmp.ge.f32.partialorder %v674, 0.0
    %vm689 = vcmp.ge.f32.partialorder %v679, 0.0
    %vm690 = vcmp.ge.f32.partialorder %v684, 0.0
    %v691 = vmul.f32 %v669, 0.2
    %v692 = vmul.f32 %v674, 0.2
    %v693 = vmul.f32 %v679, 0.2
    %v694 = vmul.f32 %v684, 0.2
    %v695 = vsel %vm687, %v669, %v691
    %v696 = vsel %vm688, %v674, %v692
    %v697 = vsel %vm689, %v679, %v693
    %v698 = vsel %vm690, %v684, %v694
    %699 = vmatprep.subr.mxu0 0.0
    %700 = vmatpush1.msra.mxu0 %v695
    %701 = vmatprep.subr.mxu0 0.0
    %702 = vmatpush1.msra.mxu0 %v696
    %703 = vmatprep.subr.mxu0 0.0
    %704 = vmatpush1.msra.mxu0 %v697
    %705 = vmatprep.subr.mxu0 0.0
    %706 = vmatpush1.msra.mxu0 %v698
    %707 = vmatprep.subr.mxu0 0.0
    %708 = vmatpush1.msra.mxu0 0.0
    %709 = vmatprep.subr.mxu0 0.0
    %710 = vmatpush1.msra.mxu0 0.0
    %711 = vmatprep.subr.mxu0 0.0
    %712 = vmatpush1.msra.mxu0 0.0
    %713 = vmatprep.subr.mxu0 0.0
    %714 = vmatpush1.msra.mxu0 0.0
    %715 = vmatprep.subr.mxu0 0.0
    %716 = vmatpush1.msra.mxu0 0.0
    %717 = vmatprep.subr.mxu0 0.0
    %718 = vmatpush1.msra.mxu0 0.0
    %719 = vmatprep.subr.mxu0 0.0
    %720 = vmatpush1.msra.mxu0 0.0
    %721 = vmatprep.subr.mxu0 0.0
    %722 = vmatpush1.msra.mxu0 0.0
    %723 = vmatprep.subr.mxu0 0.0
    %724 = vmatpush1.msra.mxu0 0.0
    %725 = vmatprep.subr.mxu0 0.0
    %726 = vmatpush1.msra.mxu0 0.0
    %727 = vmatprep.subr.mxu0 0.0
    %728 = vmatpush1.msra.mxu0 0.0
    %729 = vmatprep.subr.mxu0 0.0
    %730 = vmatpush1.msra.mxu0 0.0
    %731 = vmatprep.subr.mxu0 0.0
    %732 = vmatpush1.msra.mxu0 0.0
    %733 = vmatprep.subr.mxu0 0.0
    %734 = vmatpush1.msra.mxu0 0.0
    %735 = vmatprep.subr.mxu0 0.0
    %736 = vmatpush1.msra.mxu0 0.0
    %737 = vmatprep.subr.mxu0 0.0
    %738 = vmatpush1.msra.mxu0 0.0
    %739 = vmatprep.subr.mxu0 0.0
    %740 = vmatpush1.msra.mxu0 0.0
    %741 = vmatprep.subr.mxu0 0.0
    %742 = vmatpush1.msra.mxu0 0.0
    %743 = vmatprep.subr.mxu0 0.0
    %744 = vmatpush1.msra.mxu0 0.0
    %745 = vmatprep.subr.mxu0 0.0
    %746 = vmatpush1.msra.mxu0 0.0
    %747 = vmatprep.subr.mxu0 0.0
    %748 = vmatpush1.msra.mxu0 0.0
    %749 = vmatprep.subr.mxu0 0.0
    %750 = vmatpush1.msra.mxu0 0.0
    %751 = vmatprep.subr.mxu0 0.0
    %752 = vmatpush1.msra.mxu0 0.0
    %753 = vmatprep.subr.mxu0 0.0
    %754 = vmatpush1.msra.mxu0 0.0
    %755 = vmatprep.subr.mxu0 0.0
    %756 = vmatpush1.msra.mxu0 0.0
    %757 = vmatprep.subr.mxu0 0.0
    %758 = vmatpush1.msra.mxu0 0.0
    %759 = vmatprep.subr.mxu0 0.0
    %760 = vmatpush1.msra.mxu0 0.0
    %761 = vmatprep.subr.mxu0 0.0
    %762 = vmatpush1.msra.mxu0 0.0
    %763 = vmatprep.mubr.f32.mxu0 0.0
    %764 = vmatmul.mubr.f32.gmra.mrb[0].mxu0 %v176
    %v765 = vpop.f32.mrb[0].mxu0
    %v766 = vadd.f32 0.0, %v765
    %v767 = vpop.f32.mrb[0].mxu0
    %768 = vdwg.mxu0
    %s769 = scalar_lea.vmem [#allocation5], 3
    %770 = vst [vmem:[%s769] sm:$0x1] %v766
    // Predicated region
    $region22: #{tpu_custom_call.1} parent=1 // pred_check
      _
    $region23: #{tpu_custom_call.1} parent=1 // pred_check_branch
      %772 = sbr.rel (0) target = $region25
    $region24: #{tpu_custom_call.1} parent=1 // pred_region
      %s774 = ssub.s32 64, 64
      %775 = vsyncadd [#allocation4], %s774
      %s776 = sshll.u32 [#allocation5], 4
      %s777 = int_to_ptr.vmem [resolvable:$true] %s776
      %782 = dma.vmem_to_hbm [thread:$0]  %s777, 64, %s4, [#allocation4], 16, 16, 1
    $region25: #{tpu_custom_call.1} parent=1 // pred_fallthru
      _
    // Predicated region
    $region26: #{tpu_custom_call.1} parent=1 // pred_check
      _
    $region27: #{tpu_custom_call.1} parent=1 // pred_check_branch
      %784 = sbr.rel (0) target = $region29
    $region28: #{tpu_custom_call.1} parent=1 // pred_region
      %785 = dma.done [#allocation4], 64
    $region29: #{tpu_custom_call.1} parent=1 // pred_fallthru
      _
    %786 = vsyncpa [#allocation3], 1
    %787 = vsyncpa [#allocation4], 1

</llo_original>
